<compile_context>
chip_gen: v7x
topology: tpu7x:2x2x1
jax: 0.10.0
libtpu: 0.0.40
codegen_flags: <defaults>
</compile_context>

<pallas_src>
import functools

import jax
import jax.numpy as jnp
from jax import lax
from jax.experimental import pallas as pl
from jax.experimental.pallas import tpu as pltpu

LANE = 128
MAX_TILE_ROWS = 4096     # 4096 x 128 x 4B = 2 MiB per f32 input block
CHUNK_ROWS = 512         # in-kernel sub-chunk: 256 KiB f32 temporaries

# Graceful fallback to strings if an older jax is installed.
_ARBITRARY = getattr(pltpu, "ARBITRARY", "arbitrary")
_CORE_PARALLEL = getattr(pltpu, "CORE_PARALLEL", "parallel")


def _tensorcores_per_device():
    """v7x exposes 2 TensorCores per device; v5e/v6e expose 1."""
    try:
        kind = jax.devices()[0].device_kind.lower()
    except Exception:  # pragma: no cover - defensive
        return 1
    return 2 if ("v7" in kind or "7x" in kind) else 1


def _sllog_kernel(f_ref, r_ref, sum_ref, cnt_ref, sum_acc, cnt_acc, *,
                  rows, tile_rows, chunk, steps, acc_rows, mask_from,
                  needs_mask):
    c = pl.program_id(0)          # TensorCore split (size 1 on 1-TC chips)
    i = pl.program_id(1)          # streaming step within this split

    @pl.when(i == 0)
    def _():
        sum_acc[...] = jnp.zeros_like(sum_acc)
        cnt_acc[...] = jnp.zeros_like(cnt_acc)

    blk = c * steps + i           # logical (unclamped) block index
    n_chunks = tile_rows // chunk  # static

    def accum_chunk(k, valid):
        # Static slice of the resident block: keeps temporaries chunk-sized.
        r = r_ref[pl.ds(k * chunk, chunk), :].astype(jnp.float32)
        f = f_ref[pl.ds(k * chunk, chunk), :].astype(jnp.float32)
        nz = r != 0.0              # mask = real == 0 -> replace both with 1.0
        pos = r > 0.0              # N = sum(real > 0)
        if valid is not None:
            nz = jnp.logical_and(nz, valid)
            pos = jnp.logical_and(pos, valid)
        r_m = jnp.where(nz, r, 1.0)
        f_m = jnp.where(nz, f, 1.0)
        # Two EUP logs, no divide (an exact divide would add NR VPU work).
        contrib = jnp.abs(jnp.log(r_m) - jnp.log(f_m))
        pos_f = pos.astype(jnp.float32)
        if acc_rows == 8:
            # Pure-VPU add tree down to a single (8,128) vreg, then RMW the
            # tiny accumulator (no tile-shaped accumulator traffic).
            sum_acc[...] += contrib.reshape(-1, 8, LANE).sum(axis=0)
            cnt_acc[...] += pos_f.reshape(-1, 8, LANE).sum(axis=0)
        else:
            # Small (rows % 8 != 0) single-block case.
            sum_acc[...] += contrib.sum(axis=0, keepdims=True)
            cnt_acc[...] += pos_f.sum(axis=0, keepdims=True)

    def run_all(masked):
        for k in range(n_chunks):        # static unrolled loop
            if masked:
                row_ids = (blk * tile_rows + k * chunk
                           + lax.broadcasted_iota(jnp.int32, (chunk, LANE), 0))
                accum_chunk(k, row_ids < rows)
            else:
                accum_chunk(k, None)

    if needs_mask:
        # Only the last (possibly partial) logical block and clamped duplicate
        # blocks pay for the iota mask; every other step is mask-free.
        @pl.when(blk < mask_from)
        def _():
            run_all(masked=False)

        @pl.when(blk >= mask_from)
        def _():
            run_all(masked=True)
    else:
        run_all(masked=False)

    @pl.when(i == pl.num_programs(1) - 1)
    def _():
        sum_ref[...] = sum_acc[...].reshape(1, acc_rows, LANE)
        cnt_ref[...] = cnt_acc[...].reshape(1, acc_rows, LANE)


def _tail_partials(f_tail, r_tail):
    """Tiny jnp expression for the <128-element ragged tail."""
    r = r_tail.astype(jnp.float32)
    f = f_tail.astype(jnp.float32)
    nz = r != 0.0
    r_m = jnp.where(nz, r, 1.0)
    f_m = jnp.where(nz, f, 1.0)
    s = jnp.sum(jnp.abs(jnp.log(r_m) - jnp.log(f_m)))
    n = jnp.sum((r > 0.0).astype(jnp.float32))
    return s, n


def sllog_loss(fake, real):
    """Pallas implementation of SLlog.forward(fake, real) -> scalar loss."""
    if fake.shape != real.shape:
        # TODO(synk): F.upsample(bilinear) align_corners convention may differ
        # slightly from jax.image.resize's half-pixel convention.
        B, C = fake.shape[0], fake.shape[1]
        H, W = real.shape[2], real.shape[3]
        fake = jax.image.resize(fake, (B, C, H, W), method="bilinear")

    total = real.size
    rows = total // LANE
    tail = total - rows * LANE

    # Flatten is a free bitcast; no padded full-array copies.
    f_flat = fake.reshape(-1)
    r_flat = real.reshape(-1)

    s_tail = jnp.float32(0.0)
    n_tail = jnp.float32(0.0)
    if tail:
        s_tail, n_tail = _tail_partials(f_flat[rows * LANE:],
                                        r_flat[rows * LANE:])

    if rows == 0:
        # Everything fit in the ragged tail.
        return 100.0 * s_tail / n_tail

    if tail:
        f_flat = f_flat[:rows * LANE]
        r_flat = r_flat[:rows * LANE]
    f2 = f_flat.reshape(rows, LANE)   # zero-copy when total % 128 == 0
    r2 = r_flat.reshape(rows, LANE)

    tile_rows = rows if rows <= MAX_TILE_ROWS else MAX_TILE_ROWS
    total_blocks = pl.cdiv(rows, tile_rows)

    num_cores = _tensorcores_per_device()
    num_splits = max(1, min(num_cores, total_blocks))
    steps = pl.cdiv(total_blocks, num_splits)

    has_partial = (rows % tile_rows) != 0
    needs_clamp = num_splits * steps > total_blocks
    needs_mask = has_partial or needs_clamp
    mask_from = total_blocks - 1 if has_partial else total_blocks

    acc_rows = 8 if tile_rows % 8 == 0 else 1
    chunk = CHUNK_ROWS if tile_rows % CHUNK_ROWS == 0 else tile_rows

    def data_map(c, i):
        blk = c * steps + i
        if needs_clamp:
            blk = jnp.minimum(blk, total_blocks - 1)  # duplicate block is fully masked
        return (blk, 0)

    kernel = functools.partial(
        _sllog_kernel, rows=rows, tile_rows=tile_rows, chunk=chunk,
        steps=steps, acc_rows=acc_rows, mask_from=mask_from,
        needs_mask=needs_mask)

    split_sem = _CORE_PARALLEL if num_splits > 1 else _ARBITRARY

    out_sum, out_cnt = pl.pallas_call(
        kernel,
        out_shape=(
            jax.ShapeDtypeStruct((num_splits, acc_rows, LANE), jnp.float32),
            jax.ShapeDtypeStruct((num_splits, acc_rows, LANE), jnp.float32),
        ),
        grid_spec=pltpu.PrefetchScalarGridSpec(
            num_scalar_prefetch=0,
            grid=(num_splits, steps),
            in_specs=[
                pl.BlockSpec((tile_rows, LANE), data_map),
                pl.BlockSpec((tile_rows, LANE), data_map),
            ],
            out_specs=[
                pl.BlockSpec((1, acc_rows, LANE), lambda c, i: (c, 0, 0)),
                pl.BlockSpec((1, acc_rows, LANE), lambda c, i: (c, 0, 0)),
            ],
            scratch_shapes=[
                pltpu.VMEM((acc_rows, LANE), jnp.float32),
                pltpu.VMEM((acc_rows, LANE), jnp.float32),
            ],
        ),
        compiler_params=pltpu.CompilerParams(
            dimension_semantics=(split_sem, _ARBITRARY),
            vmem_limit_bytes=32 * 1024 * 1024),
    )(f2, r2)

    s = jnp.sum(out_sum) + s_tail
    n = jnp.sum(out_cnt) + n_tail
    return 100.0 * s / n


def _sllog_reference(fake, real):
    """Pure-JAX reference matching the PyTorch forward."""
    if fake.shape != real.shape:
        B, C = fake.shape[0], fake.shape[1]
        H, W = real.shape[2], real.shape[3]
        fake = jax.image.resize(fake, (B, C, H, W), method="bilinear")
    fake = fake.astype(jnp.float32)
    real = real.astype(jnp.float32)
    N = jnp.sum((real > 0).astype(jnp.float32))
    mask = real == 0
    fake = jnp.where(mask, 1.0, fake)
    real = jnp.where(mask, 1.0, real)
    return 100.0 * jnp.sum(jnp.abs(jnp.log(real) - jnp.log(fake))) / N


if __name__ == "__main__":
    key = jax.random.PRNGKey(0)

    def make_case(k, shape_fake, shape_real):
        k1, k2, k3 = jax.random.split(k, 3)
        fake = jax.random.uniform(k1, shape_fake, jnp.float32, 0.1, 10.0)
        depth = jax.random.uniform(k2, shape_real, jnp.float32, 0.1, 10.0)
        valid = jax.random.uniform(k3, shape_real, jnp.float32) > 0.2
        real = jnp.where(valid, depth, 0.0)
        return fake, real

    cases = [
        # (fake shape, real shape, tolerance)
        ((2, 4, 16, 16), (2, 4, 16, 16), 1e-5),        # single block, no mask
        ((2, 3, 17, 19), (2, 3, 17, 19), 1e-5),        # ragged lane tail
        ((1, 1, 640, 1024), (1, 1, 640, 1024), 1e-3),  # multi-block stream + partial-block mask
        ((2, 1, 8, 8), (2, 1, 16, 16), 1e-5),          # resize path
    ]
    keys = jax.random.split(key, len(cases))
    for (fs, rs, tol), k in zip(cases, keys):
        fake, real = make_case(k, fs, rs)
        loss = jax.block_until_ready(sllog_loss(fake, real))
        ref = jax.block_until_ready(_sllog_reference(fake, real))
        assert jnp.allclose(loss, ref, rtol=tol, atol=tol), (fs, rs, loss, ref)

    print("KERNEL_OK")
</pallas_src>

<mosaic_0001>
module attributes {stable_mosaic.version = 11 : i64} {
  func.func @_sllog_kernel(%arg0: i32, %arg1: i32, %arg2: memref<16x128xf32, #tpu.memory_space<vmem>>, %arg3: memref<16x128xf32, #tpu.memory_space<vmem>>, %arg4: memref<1x8x128xf32, #tpu.memory_space<vmem>>, %arg5: memref<1x8x128xf32, #tpu.memory_space<vmem>>, %arg6: memref<8x128xf32, #tpu.memory_space<vmem>>, %arg7: memref<8x128xf32, #tpu.memory_space<vmem>>) attributes {dimension_semantics = [#tpu.dimension_semantics<arbitrary>, #tpu.dimension_semantics<arbitrary>], iteration_bounds = array<i64: 1, 1>, scalar_prefetch = 0 : i64, scratch_operands = 2 : i64, tpu.core_type = #tpu.core_type<tc>, window_params = [{transform_indices = @transform_0, window_bounds = array<i64: 16, 128>}, {transform_indices = @transform_1, window_bounds = array<i64: 16, 128>}, {transform_indices = @transform_2, window_bounds = array<i64: 1, 8, 128>}, {transform_indices = @transform_3, window_bounds = array<i64: 1, 8, 128>}]} {
    %c0_i32 = arith.constant 0 : i32
    %0 = arith.cmpi eq, %arg1, %c0_i32 : i32
    %1 = arith.extui %0 : i1 to i32
    %c0_i32_0 = arith.constant 0 : i32
    %2 = arith.cmpi ne, %1, %c0_i32_0 : i32
    scf.if %2 {
      %cst_19 = arith.constant 0.000000e+00 : f32
      %32 = vector.broadcast %cst_19 : f32 to vector<8x128xf32>
      %c0_20 = arith.constant 0 : index
      %c0_21 = arith.constant 0 : index
      %33 = vector.load %arg6[%c0_20, %c0_21] : memref<8x128xf32, #tpu.memory_space<vmem>>, vector<8x128xf32>
      tpu.vector_store %arg6[%c0_20, %c0_21], %32 {strides = array<i32>} : memref<8x128xf32, #tpu.memory_space<vmem>>, vector<8x128xf32>,
      %cst_22 = arith.constant 0.000000e+00 : f32
      %34 = vector.broadcast %cst_22 : f32 to vector<8x128xf32>
      %c0_23 = arith.constant 0 : index
      %c0_24 = arith.constant 0 : index
      %35 = vector.load %arg7[%c0_23, %c0_24] : memref<8x128xf32, #tpu.memory_space<vmem>>, vector<8x128xf32>
      tpu.vector_store %arg7[%c0_23, %c0_24], %34 {strides = array<i32>} : memref<8x128xf32, #tpu.memory_space<vmem>>, vector<8x128xf32>,
    } else {
    }
    %c0 = arith.constant 0 : index
    %c0_1 = arith.constant 0 : index
    %3 = vector.load %arg3[%c0, %c0_1] : memref<16x128xf32, #tpu.memory_space<vmem>>, vector<16x128xf32>
    %c0_2 = arith.constant 0 : index
    %c0_3 = arith.constant 0 : index
    %4 = vector.load %arg2[%c0_2, %c0_3] : memref<16x128xf32, #tpu.memory_space<vmem>>, vector<16x128xf32>
    %cst = arith.constant 0.000000e+00 : f32
    %5 = vector.broadcast %cst : f32 to vector<16x128xf32>
    %6 = arith.cmpf one, %3, %5 : vector<16x128xf32>
    %cst_4 = arith.constant 0.000000e+00 : f32
    %7 = vector.broadcast %cst_4 : f32 to vector<16x128xf32>
    %8 = arith.cmpf ogt, %3, %7 : vector<16x128xf32>
    %cst_5 = arith.constant 1.000000e+00 : f32
    %9 = vector.broadcast %cst_5 : f32 to vector<16x128xf32>
    %10 = arith.select %6, %3, %9 : vector<16x128xi1>, vector<16x128xf32>
    %cst_6 = arith.constant 1.000000e+00 : f32
    %11 = vector.broadcast %cst_6 : f32 to vector<16x128xf32>
    %12 = arith.select %6, %4, %11 : vector<16x128xi1>, vector<16x128xf32>
    %13 = math.log %10 : vector<16x128xf32>
    %14 = math.log %12 : vector<16x128xf32>
    %15 = arith.subf %13, %14 : vector<16x128xf32>
    %16 = math.absf %15 : vector<16x128xf32>
    %17 = arith.extui %8 : vector<16x128xi1> to vector<16x128xi32>
    %18 = arith.sitofp %17 : vector<16x128xi32> to vector<16x128xf32>
    %c0_7 = arith.constant 0 : index
    %c0_8 = arith.constant 0 : index
    %19 = vector.load %arg6[%c0_7, %c0_8] : memref<8x128xf32, #tpu.memory_space<vmem>>, vector<8x128xf32>
    %20 = vector.shape_cast %16 : vector<16x128xf32> to vector<2x8x128xf32>
    %cst_9 = arith.constant dense<0.000000e+00> : vector<8x128xf32>
    %21 = vector.multi_reduction <add>, %20, %cst_9 [0] : vector<2x8x128xf32> to vector<8x128xf32>
    %22 = arith.addf %19, %21 : vector<8x128xf32>
    %c0_10 = arith.constant 0 : index
    %c0_11 = arith.constant 0 : index
    %23 = vector.load %arg6[%c0_10, %c0_11] : memref<8x128xf32, #tpu.memory_space<vmem>>, vector<8x128xf32>
    tpu.vector_store %arg6[%c0_10, %c0_11], %22 {strides = array<i32>} : memref<8x128xf32, #tpu.memory_space<vmem>>, vector<8x128xf32>,
    %c0_12 = arith.constant 0 : index
    %c0_13 = arith.constant 0 : index
    %24 = vector.load %arg7[%c0_12, %c0_13] : memref<8x128xf32, #tpu.memory_space<vmem>>, vector<8x128xf32>
    %25 = vector.shape_cast %18 : vector<16x128xf32> to vector<2x8x128xf32>
    %cst_14 = arith.constant dense<0.000000e+00> : vector<8x128xf32>
    %26 = vector.multi_reduction <add>, %25, %cst_14 [0] : vector<2x8x128xf32> to vector<8x128xf32>
    %27 = arith.addf %24, %26 : vector<8x128xf32>
    %c0_15 = arith.constant 0 : index
    %c0_16 = arith.constant 0 : index
    %28 = vector.load %arg7[%c0_15, %c0_16] : memref<8x128xf32, #tpu.memory_space<vmem>>, vector<8x128xf32>
    tpu.vector_store %arg7[%c0_15, %c0_16], %27 {strides = array<i32>} : memref<8x128xf32, #tpu.memory_space<vmem>>, vector<8x128xf32>,
    %c0_i32_17 = arith.constant 0 : i32
    %29 = arith.cmpi eq, %arg1, %c0_i32_17 : i32
    %30 = arith.extui %29 : i1 to i32
    %c0_i32_18 = arith.constant 0 : i32
    %31 = arith.cmpi ne, %30, %c0_i32_18 : i32
    scf.if %31 {
      %c0_19 = arith.constant 0 : index
      %c0_20 = arith.constant 0 : index
      %32 = vector.load %arg6[%c0_19, %c0_20] : memref<8x128xf32, #tpu.memory_space<vmem>>, vector<8x128xf32>
      %33 = vector.shape_cast %32 : vector<8x128xf32> to vector<1x8x128xf32>
      %c0_21 = arith.constant 0 : index
      %c0_22 = arith.constant 0 : index
      %c0_23 = arith.constant 0 : index
      %34 = vector.load %arg4[%c0_21, %c0_22, %c0_23] : memref<1x8x128xf32, #tpu.memory_space<vmem>>, vector<1x8x128xf32>
      tpu.vector_store %arg4[%c0_21, %c0_22, %c0_23], %33 {strides = array<i32>} : memref<1x8x128xf32, #tpu.memory_space<vmem>>, vector<1x8x128xf32>,
      %c0_24 = arith.constant 0 : index
      %c0_25 = arith.constant 0 : index
      %35 = vector.load %arg7[%c0_24, %c0_25] : memref<8x128xf32, #tpu.memory_space<vmem>>, vector<8x128xf32>
      %36 = vector.shape_cast %35 : vector<8x128xf32> to vector<1x8x128xf32>
      %c0_26 = arith.constant 0 : index
      %c0_27 = arith.constant 0 : index
      %c0_28 = arith.constant 0 : index
      %37 = vector.load %arg5[%c0_26, %c0_27, %c0_28] : memref<1x8x128xf32, #tpu.memory_space<vmem>>, vector<1x8x128xf32>
      tpu.vector_store %arg5[%c0_26, %c0_27, %c0_28], %36 {strides = array<i32>} : memref<1x8x128xf32, #tpu.memory_space<vmem>>, vector<1x8x128xf32>,
    } else {
    }
    return
  }
  func.func @transform_0(%arg0: i32, %arg1: i32) -> (i32, i32) {
    %c1_i32 = arith.constant 1 : i32
    %0 = arith.muli %arg0, %c1_i32 : i32
    %1 = arith.addi %0, %arg1 : i32
    %c0_i32 = arith.constant 0 : i32
    %c0_i32_0 = arith.constant 0 : i32
    return %1, %c0_i32 : i32, i32
  }
  func.func @transform_1(%arg0: i32, %arg1: i32) -> (i32, i32) {
    %c1_i32 = arith.constant 1 : i32
    %0 = arith.muli %arg0, %c1_i32 : i32
    %1 = arith.addi %0, %arg1 : i32
    %c0_i32 = arith.constant 0 : i32
    %c0_i32_0 = arith.constant 0 : i32
    return %1, %c0_i32 : i32, i32
  }
  func.func @transform_2(%arg0: i32, %arg1: i32) -> (i32, i32, i32) {
    %c0_i32 = arith.constant 0 : i32
    %c0_i32_0 = arith.constant 0 : i32
    %c0_i32_1 = arith.constant 0 : i32
    return %arg0, %c0_i32, %c0_i32_0 : i32, i32, i32
  }
  func.func @transform_3(%arg0: i32, %arg1: i32) -> (i32, i32, i32) {
    %c0_i32 = arith.constant 0 : i32
    %c0_i32_0 = arith.constant 0 : i32
    %c0_i32_1 = arith.constant 0 : i32
    return %arg0, %c0_i32, %c0_i32_0 : i32, i32, i32
  }
}

</mosaic_0001>

<llo_original>
// kernel: tpu_custom_call.1
$region0: #{tpu_custom_call.1}
  #allocation0 [shape = 'u32[]', space=smem, size = 0x4, offset = 0x4, fixed_abs, tag = 'smem constant byte address 0x4 - core index']
  #allocation1 [shape = 'u32[144,128]{1,0:T(1,128)}', space=vmem, size = 0x12000, scoped, tag = 'internal scratch']
  #allocation2 [shape = 'f32[8,128]{1,0:T(8,128)}', space=vmem, size = 0x1000, scoped, tag = 'scratch operand']
  #allocation3 [shape = 'f32[8,128]{1,0:T(8,128)}', space=vmem, size = 0x1000, scoped, tag = 'scratch operand']
  %s0 = inlined_call_operand.hbm [shape: f32[16,128], index: 0, kind: input, shape index: {}]
  %s1 = inlined_call_operand.hbm [shape: f32[16,128], index: 1, kind: input, shape index: {}]
  %s2 = inlined_call_operand.hbm [shape: f32[1,8,128], index: 2, kind: output, shape index: {0}]
  %s3 = inlined_call_operand.hbm [shape: f32[1,8,128], index: 3, kind: output, shape index: {1}]
  %4 = xla_tuple %s2, %s3
  %s5 = sld [smem:[#allocation0]]
  $region42: #{tpu_custom_call.1} parent=0
    _
  %s7 = ssub.s32 1, %s5
  %s8 = scalar_select 0, %s7, %s5
  $region1: #{tpu_custom_call.1} parent=0
    #allocation4 [shape = 'u8[8192]{0}', space=vmem, size = 0x2000, scoped, tag = 'input window, operand 0, single buffered']
    #allocation5 [shape = 's32[1]{0}', space=sflag, size = 0x4, scoped, tag = 'scoped memory for tpu_custom_call.1']
    #allocation6 [shape = 's32[1]{0}', space=sflag, size = 0x4, scoped, tag = 'scoped memory for tpu_custom_call.1']
    #allocation7 [shape = 'u8[8192]{0}', space=vmem, size = 0x2000, scoped, tag = 'input window, operand 1, single buffered']
    #allocation8 [shape = 's32[1]{0}', space=sflag, size = 0x4, scoped, tag = 'scoped memory for tpu_custom_call.1']
    #allocation9 [shape = 'u8[4096]{0}', space=vmem, size = 0x1000, scoped, tag = 'output window, operand 0, single buffered']
    #allocation10 [shape = 'u8[4096]{0}', space=vmem, size = 0x1000, scoped, tag = 'output window, operand 1, single buffered']
    #allocation11 [shape = 's32[1]{0}', space=sflag, size = 0x4, scoped, tag = 'scoped memory for tpu_custom_call.1']
    %9 = vsyncpa [#allocation5], 0
    %10 = vsyncpa [#allocation8], 0
    %11 = vsyncpa [#allocation6], 0
    %12 = vsyncpa [#allocation11], 0
    // Predicated region
    $region2: #{tpu_custom_call.1} parent=1 // pred_check
      _
    $region3: #{tpu_custom_call.1} parent=1 // pred_check_branch
      %14 = sbr.rel (0) target = $region5
    $region4: #{tpu_custom_call.1} parent=1 // pred_region
      %s15 = sadd.s32 0, 0
      %s16 = smul.u32 2, %s15
      %s18 = ssub.s32 256, 256
      %19 = vsyncadd [#allocation5], %s18
      %s20 = smul.addr %s16, 128
      %s21 = scalar_lea.hbm %s0, %s20
      %s22 = sshll.u32 [#allocation4], 4
      %s23 = int_to_ptr.vmem [resolvable:$true] %s22
      %28 = dma.hbm_to_vmem [thread:$0]  %s21, 256, %s23, [#allocation5], 128, 128, 8
    $region5: #{tpu_custom_call.1} parent=1 // pred_fallthru
      _
    // Predicated region
    $region6: #{tpu_custom_call.1} parent=1 // pred_check
      _
    $region7: #{tpu_custom_call.1} parent=1 // pred_check_branch
      %30 = sbr.rel (0) target = $region9
    $region8: #{tpu_custom_call.1} parent=1 // pred_region
      %s31 = sadd.s32 0, 0
      %s32 = smul.u32 2, %s31
      %s34 = ssub.s32 256, 256
      %35 = vsyncadd [#allocation8], %s34
      %s36 = smul.addr %s32, 128
      %s37 = scalar_lea.hbm %s1, %s36
      %s38 = sshll.u32 [#allocation7], 4
      %s39 = int_to_ptr.vmem [resolvable:$true] %s38
      %44 = dma.hbm_to_vmem [thread:$0]  %s37, 256, %s39, [#allocation8], 128, 128, 8
    $region9: #{tpu_custom_call.1} parent=1 // pred_fallthru
      _
    // Predicated region
    $region10: #{tpu_custom_call.1} parent=1 // pred_check
      _
    $region11: #{tpu_custom_call.1} parent=1 // pred_check_branch
      %46 = sbr.rel (0) target = $region13
    $region12: #{tpu_custom_call.1} parent=1 // pred_region
      %47 = dma.done [#allocation5], 256
    $region13: #{tpu_custom_call.1} parent=1 // pred_fallthru
      _
    // Predicated region
    $region14: #{tpu_custom_call.1} parent=1 // pred_check
      _
    $region15: #{tpu_custom_call.1} parent=1 // pred_check_branch
      %49 = sbr.rel (0) target = $region17
    $region16: #{tpu_custom_call.1} parent=1 // pred_region
      %50 = dma.done [#allocation8], 256
    $region17: #{tpu_custom_call.1} parent=1 // pred_fallthru
      _
    %s51 = sadd.s32 0, 0
    %s52 = smul.u32 2, %s51
    %s53 = sadd.s32 0, 0
    %s54 = smul.u32 2, %s53
    %p55 = scmp.eq.s32.totalorder 0, 0
    // Predicated region
    $region18: #{tpu_custom_call.1} parent=1 // pred_check
      %p56 = pneg %p55
    $region19: #{tpu_custom_call.1} parent=1 // pred_check_branch
      %58 = sbr.rel (%p56) target = $region21
    $region20: #{tpu_custom_call.1} parent=1 // pred_region
      %59 = vst [vmem:[#allocation2] sm:$0xff] 0.0
      %60 = vst [vmem:[#allocation3] sm:$0xff] 0.0
    $region21: #{tpu_custom_call.1} parent=1 // pred_fallthru
      _
    %v61 = vld [vmem:[#allocation7] sm:$0xff]
    %v62 = vld [vmem:[#allocation7 + $0x8] sm:$0xff]
    %v63 = vld [vmem:[#allocation4] sm:$0xff]
    %v64 = vld [vmem:[#allocation4 + $0x8] sm:$0xff]
    %vm65 = vcmp.ne.f32.partialorder %v61, 0.0
    %vm66 = vcmp.ne.f32.partialorder %v62, 0.0
    %vm67 = vcmp.gt.f32.partialorder %v61, 0.0
    %vm68 = vcmp.gt.f32.partialorder %v62, 0.0
    %v69 = vsel %vm65, %v61, 1.0
    %v70 = vsel %vm66, %v62, 1.0
    %v71 = vsel %vm65, %v63, 1.0
    %v72 = vsel %vm66, %v64, 1.0
    %v73 = vlog2.pop %v69
    %v74 = vmul.f32 %v73, 0.6931472
    %v75 = vlog2.pop %v70
    %v76 = vmul.f32 %v75, 0.6931472
    %v77 = vlog2.pop %v71
    %v78 = vmul.f32 %v77, 0.6931472
    %v79 = vlog2.pop %v72
    %v80 = vmul.f32 %v79, 0.6931472
    %v81 = vsub.f32 %v74, %v78
    %v82 = vsub.f32 %v76, %v80
    %v83 = vand.u32 2147483647, %v81
    %v84 = vand.u32 2147483647, %v82
    %v85 = vsel %vm67, 1, 0
    %v86 = vsel %vm68, 1, 0
    %v87 = vcvt.s32.f32 %v85
    %v88 = vcvt.s32.f32 %v86
    %v89 = vld [vmem:[#allocation2] sm:$0xff]
    %v90 = vadd.f32 %v83, %v84
    %v91 = vadd.f32 %v89, %v90
    %92 = vst [vmem:[#allocation2] sm:$0xff] %v91
    %v93 = vld [vmem:[#allocation3] sm:$0xff]
    %v94 = vadd.f32 %v87, %v88
    %v95 = vadd.f32 %v93, %v94
    %96 = vst [vmem:[#allocation3] sm:$0xff] %v95
    // Predicated region
    $region22: #{tpu_custom_call.1} parent=1 // pred_check
      %p97 = pneg %p55
    $region23: #{tpu_custom_call.1} parent=1 // pred_check_branch
      %99 = sbr.rel (%p97) target = $region25
    $region24: #{tpu_custom_call.1} parent=1 // pred_region
      %v100 = vld [vmem:[#allocation2] sm:$0xff]
      %101 = vst [vmem:[#allocation9] sm:$0xff] %v100
      %v102 = vld [vmem:[#allocation3] sm:$0xff]
      %103 = vst [vmem:[#allocation10] sm:$0xff] %v102
    $region25: #{tpu_custom_call.1} parent=1 // pred_fallthru
      _
    // Predicated region
    $region26: #{tpu_custom_call.1} parent=1 // pred_check
      _
    $region27: #{tpu_custom_call.1} parent=1 // pred_check_branch
      %105 = sbr.rel (0) target = $region29
    $region28: #{tpu_custom_call.1} parent=1 // pred_region
      %s107 = ssub.s32 128, 128
      %108 = vsyncadd [#allocation6], %s107
      %s110 = sshll.u32 [#allocation9], 4
      %s111 = int_to_ptr.vmem [resolvable:$true] %s110
      %113 = dma.vmem_to_hbm [thread:$0]  %s111, 128, %s2, [#allocation6]
    $region29: #{tpu_custom_call.1} parent=1 // pred_fallthru
      _
    // Predicated region
    $region30: #{tpu_custom_call.1} parent=1 // pred_check
      _
    $region31: #{tpu_custom_call.1} parent=1 // pred_check_branch
      %115 = sbr.rel (0) target = $region33
    $region32: #{tpu_custom_call.1} parent=1 // pred_region
      %s117 = ssub.s32 128, 128
      %118 = vsyncadd [#allocation11], %s117
      %s120 = sshll.u32 [#allocation10], 4
      %s121 = int_to_ptr.vmem [resolvable:$true] %s120
      %123 = dma.vmem_to_hbm [thread:$0]  %s121, 128, %s3, [#allocation11]
    $region33: #{tpu_custom_call.1} parent=1 // pred_fallthru
      _
    // Predicated region
    $region34: #{tpu_custom_call.1} parent=1 // pred_check
      _
    $region35: #{tpu_custom_call.1} parent=1 // pred_check_branch
      %125 = sbr.rel (0) target = $region37
    $region36: #{tpu_custom_call.1} parent=1 // pred_region
      %126 = dma.done [#allocation6], 128
    $region37: #{tpu_custom_call.1} parent=1 // pred_fallthru
      _
    // Predicated region
    $region38: #{tpu_custom_call.1} parent=1 // pred_check
      _
    $region39: #{tpu_custom_call.1} parent=1 // pred_check_branch
      %128 = sbr.rel (0) target = $region41
    $region40: #{tpu_custom_call.1} parent=1 // pred_region
      %129 = dma.done [#allocation11], 128
    $region41: #{tpu_custom_call.1} parent=1 // pred_fallthru
      _
    %130 = vsyncpa [#allocation5], 1
    %131 = vsyncpa [#allocation8], 1
    %132 = vsyncpa [#allocation6], 1
    %133 = vsyncpa [#allocation11], 1

</llo_original>
